<compile_context>
chip_gen: v6e
topology: v6e:2x2x1
jax: 0.10.0
libtpu: 0.0.40
codegen_flags: <defaults>
</compile_context>

<pallas_src>
import functools

import numpy as np
import jax
import jax.numpy as jnp
from jax.experimental import pallas as pl
from jax.experimental.pallas import tpu as pltpu


LANE = 128
VMEM_FLOOR = 32 * 1024 * 1024            # always-safe scoped-VMEM request
V7X_SAFE_WORKING_SET = 48 * 1024 * 1024  # ~3/4 of v7x's 64 MiB physical VMEM


def _round_up(x, m):
    return ((x + m - 1) // m) * m


def _vmem_limit(working_set_bytes):
    # Enough scoped VMEM for the working set plus compiler headroom, never
    # below the 32 MiB that is safe on every generation.
    return int(max(VMEM_FLOOR, min(working_set_bytes + (16 << 20), 112 << 20)))


def _node_tiling(n_nodes, max_tile, *, max_pad_frac=0.125, min_dst_tiles=2):
    """Pick (padded node count, node tile).

    Prefers the largest tile (<= max_tile, multiple of 128) whose padding stays
    within `max_pad_frac`, so awkward node counts don't silently degrade to
    128x128 tiles; then splits the padded range into >= 2 dst tiles when
    possible so the v7x megacore 'parallel' axis has work for both cores.
    """
    np_min = _round_up(n_nodes, LANE)
    max_tile = max(LANE, (max_tile // LANE) * LANE)
    budget = max(np_min, _round_up(int(n_nodes * (1.0 + max_pad_frac)), LANE))
    tile, padded = LANE, np_min
    t = LANE
    while t <= min(max_tile, np_min):
        p = _round_up(n_nodes, t)
        if p <= budget:
            tile, padded = t, p
        t += LANE
    if padded // tile < min_dst_tiles:
        t = tile - LANE
        while t >= LANE:
            if padded % t == 0 and padded // t >= min_dst_tiles:
                tile = t
                break
            t -= LANE
    return padded, tile


# ----------------------------------------------------------------------------
# Kernel 1: per-relation feature transform   XW = X @ [W_0 | ... | W_{R-1}]
#   grid = (dst tiles,)  — one wide, MXU-filling matmul per tile; the stacked
#   weight block is resident (constant index_map).
# ----------------------------------------------------------------------------
def _feat_transform_kernel(x_ref, w_ref, o_ref):
    o_ref[...] = jnp.dot(x_ref[...], w_ref[...],
                         preferred_element_type=jnp.float32).astype(o_ref.dtype)


def feature_transform(x, w_stacked, *, tm, out_dtype):
    np_, f_in = x.shape
    _, wide = w_stacked.shape
    out_isz = jnp.dtype(out_dtype).itemsize

    def _ws(t):
        return (2 * t * f_in * x.dtype.itemsize          # X tile, double-buffered
                + 2 * f_in * wide * w_stacked.dtype.itemsize  # resident W (conservative x2)
                + 2 * t * wide * out_isz)                 # output tile, double-buffered

    # Keep the transform inside the v7x-safe VMEM budget for very large f_in.
    t = tm
    while t > LANE and _ws(t) > V7X_SAFE_WORKING_SET:
        t -= LANE
        while t > LANE and np_ % t:
            t -= LANE
    tm = t

    return pl.pallas_call(
        _feat_transform_kernel,
        out_shape=jax.ShapeDtypeStruct((np_, wide), out_dtype),
        grid_spec=pltpu.PrefetchScalarGridSpec(
            num_scalar_prefetch=0,
            grid=(np_ // tm,),
            in_specs=[
                pl.BlockSpec((tm, f_in), lambda i: (i, 0)),    # X tile
                pl.BlockSpec((f_in, wide), lambda i: (0, 0)),  # stacked W, resident
            ],
            out_specs=pl.BlockSpec((tm, wide), lambda i: (i, 0)),
        ),
        compiler_params=pltpu.CompilerParams(
            dimension_semantics=("parallel",),
            vmem_limit_bytes=_vmem_limit(_ws(tm))),
        cost_estimate=pl.CostEstimate(
            flops=2 * np_ * f_in * wide,
            transcendentals=0,
            bytes_accessed=int(x.size * x.dtype.itemsize
                               + w_stacked.size * w_stacked.dtype.itemsize
                               + np_ * wide * out_isz)),
    )(x, w_stacked)


# ----------------------------------------------------------------------------
# Kernel 2: relational aggregation
#   out[i-tile] = sum_{r,k} A[r, i-tile, k-tile] @ XW_r[k-tile]  (+bias, relu)
#   grid = (dst tiles [parallel], relations, src tiles)  (reduction axes last)
#   Accumulates in an f32 VMEM scratch; bias+relu+cast fused into the epilogue
#   so the output block is written once, in the stream dtype.
# ----------------------------------------------------------------------------
def _rgcn_agg_kernel(a_ref, xw_ref, b_ref, o_ref, acc_ref, *,
                     apply_relu, per_relation_xw, xw_resident, tk, npad):
    r = pl.program_id(1)
    k = pl.program_id(2)

    @pl.when((r == 0) & (k == 0))
    def _():
        acc_ref[...] = jnp.zeros_like(acc_ref)

    if xw_resident:
        # Whole XW (flattened [R*Np, Fout] or [Np, Fin]) is resident in VMEM;
        # slice out the (relation, src-tile) rows we need. tk and npad are
        # multiples of 128 so the dynamic start is lane/sublane aligned.
        row0 = k * tk + (r * npad if per_relation_xw else 0)
        row0 = pl.multiple_of(row0, LANE)
        xw = xw_ref[pl.ds(row0, tk), :]
    else:
        xw = xw_ref[...]

    acc_ref[...] += jnp.dot(a_ref[...], xw, preferred_element_type=jnp.float32)

    @pl.when((r == pl.num_programs(1) - 1) & (k == pl.num_programs(2) - 1))
    def _():
        h = acc_ref[...] + b_ref[...]
        if apply_relu:
            h = jnp.maximum(h, 0.0)
        o_ref[...] = h.astype(o_ref.dtype)


def rel_graph_agg(a, xw_flat, bias, *, per_relation_xw, apply_relu,
                  tm, tk, out_dtype, force_xw_tiled=False):
    num_rels, np_, _ = a.shape
    f_out = xw_flat.shape[-1]
    if per_relation_xw:
        assert xw_flat.shape[0] == num_rels * np_
    else:
        assert xw_flat.shape[0] == np_

    a_isz = a.dtype.itemsize
    xw_isz = xw_flat.dtype.itemsize
    out_isz = jnp.dtype(out_dtype).itemsize

    base_ws = (2 * tm * tk * a_isz          # A tile, double-buffered
               + 2 * tm * f_out * out_isz   # output block, double-buffered
               + tm * f_out * 4             # f32 accumulator scratch
               + 2 * f_out * 4)             # bias
    xw_total = xw_flat.size * xw_isz
    xw_resident = ((not force_xw_tiled)
                   and base_ws + 2 * xw_total <= V7X_SAFE_WORKING_SET)

    if xw_resident:
        # Constant index_map => XW is DMA'd from HBM exactly once and stays in
        # VMEM for the whole grid (no (Np/tm)x re-stream).
        xw_spec = pl.BlockSpec(xw_flat.shape, lambda i, r, k: (0, 0))
        working_set = base_ws + 2 * xw_total
        xw_hbm_bytes = xw_total
    else:
        # Fallback: stream (tk, f_out) tiles (re-fetched once per dst tile).
        kt = np_ // tk
        if per_relation_xw:
            xw_spec = pl.BlockSpec((tk, f_out), lambda i, r, k: (r * kt + k, 0))
        else:
            xw_spec = pl.BlockSpec((tk, f_out), lambda i, r, k: (k, 0))
        working_set = base_ws + 2 * tk * f_out * xw_isz
        xw_hbm_bytes = (np_ // tm) * xw_total

    kernel = functools.partial(
        _rgcn_agg_kernel, apply_relu=apply_relu,
        per_relation_xw=per_relation_xw, xw_resident=xw_resident,
        tk=tk, npad=np_)

    return pl.pallas_call(
        kernel,
        out_shape=jax.ShapeDtypeStruct((np_, f_out), out_dtype),
        grid_spec=pltpu.PrefetchScalarGridSpec(
            num_scalar_prefetch=0,
            grid=(np_ // tm, num_rels, np_ // tk),
            in_specs=[
                # A_r tile; relation axis squeezed out -> kernel sees (tm, tk)
                pl.BlockSpec((pl.Squeezed(), tm, tk),
                             lambda i, r, k: (r, i, k)),
                xw_spec,
                pl.BlockSpec((1, f_out), lambda i, r, k: (0, 0)),   # bias
            ],
            out_specs=pl.BlockSpec((tm, f_out), lambda i, r, k: (i, 0)),
            scratch_shapes=[pltpu.VMEM((tm, f_out), jnp.float32)],
        ),
        compiler_params=pltpu.CompilerParams(
            dimension_semantics=("parallel", "arbitrary", "arbitrary"),
            vmem_limit_bytes=_vmem_limit(working_set)),
        cost_estimate=pl.CostEstimate(
            flops=2 * num_rels * np_ * np_ * f_out,
            transcendentals=0,
            bytes_accessed=int(a.size * a_isz + xw_hbm_bytes
                               + np_ * f_out * out_isz + f_out * 4)),
    )(a, xw_flat, bias)


# ----------------------------------------------------------------------------
# EntityClassify forward: stack of RelGraphConvLayers
# ----------------------------------------------------------------------------
def entity_classify_forward(h, blocks, params, *, stream_dtype=jnp.bfloat16,
                            max_block_m=1024, max_block_k=1024,
                            force_xw_tiled=False):
    """h: [N, Fin]; blocks: list of [R, N, N] right-normalized adjacencies;
    params: list of (W [R,Fin,Fout] or None, bias [Fout], apply_relu)."""
    n_nodes, f_in = h.shape
    np_, tm = _node_tiling(n_nodes, max_block_m)
    tk = tm
    if max_block_k < tm:
        tk = max(LANE, (max_block_k // LANE) * LANE)
        while np_ % tk:
            tk -= LANE

    f_out_final = params[-1][1].shape[-1]
    fin_p0 = _round_up(f_in, LANE)

    # Pad node features once (rows to np_, lanes to a 128 multiple) and cast
    # once to the stream dtype. Zero padding keeps the math exact.
    hp = jnp.pad(h, ((0, np_ - n_nodes), (0, fin_p0 - f_in))).astype(stream_dtype)

    # Pad + cast each DISTINCT adjacency block exactly once (dominant HBM
    # tensor; never re-materialized per layer).
    a_cache, a_prepared = {}, []
    for a in blocks:
        key = id(a)
        if key not in a_cache:
            a_cache[key] = jnp.pad(
                a, ((0, 0), (0, np_ - a.shape[1]), (0, np_ - a.shape[2]))
            ).astype(stream_dtype)
        a_prepared.append(a_cache[key])

    for li, (a_p, (w, b, relu)) in enumerate(zip(a_prepared, params)):
        num_rels = a_p.shape[0]
        fin_p = hp.shape[1]
        fout = b.shape[-1]
        fout_p = _round_up(fout, LANE)
        is_last = li == len(params) - 1
        out_dtype = jnp.float32 if is_last else stream_dtype

        bias_p = jnp.pad(b.reshape(1, -1).astype(jnp.float32),
                         ((0, 0), (0, fout_p - fout)))

        if w is None:
            # weight=False layer: aggregation runs directly on X. Only valid
            # because such a layer preserves the (padded) feature width.
            assert fout_p == fin_p, "weightless layer must keep feature width"
            xw_flat = hp                              # [Np, Fin]
            per_rel = False
        else:
            w_p = jnp.pad(w, ((0, 0), (0, fin_p - w.shape[1]),
                              (0, fout_p - w.shape[2]))).astype(stream_dtype)
            # [Fin, R*Fout]: one wide, lane-dense matmul for all relations.
            w_stacked = jnp.transpose(w_p, (1, 0, 2)).reshape(
                fin_p, num_rels * fout_p)
            xw = feature_transform(hp, w_stacked, tm=tm, out_dtype=stream_dtype)
            # Flatten to [R*Np, Fout] (relation-major rows) so the aggregation
            # can keep all of XW resident in VMEM and slice per (r, src tile).
            # XW is tiny compared to A, so this relayout pass is negligible.
            xw_flat = (xw.reshape(np_, num_rels, fout_p)
                         .transpose(1, 0, 2)
                         .reshape(num_rels * np_, fout_p))
            per_rel = True

        # NOTE: padded dst rows of hp hold relu(bias) rather than 0 when
        # bias != 0; harmless because padded src columns of A are zero and the
        # padded rows are sliced off at the end (revisit for self_loop=True).
        hp = rel_graph_agg(a_p, xw_flat, bias_p, per_relation_xw=per_rel,
                           apply_relu=relu, tm=tm, tk=tk, out_dtype=out_dtype,
                           force_xw_tiled=force_xw_tiled)

    return hp[:n_nodes, :f_out_final]


# ----------------------------------------------------------------------------
# Deterministic parameter / input construction + pure-JAX reference
# ----------------------------------------------------------------------------
def xavier_uniform(key, shape, gain):
    fan_in, fan_out = shape[-2], shape[-1]
    limit = gain * np.sqrt(6.0 / (fan_in + fan_out))
    return jax.random.uniform(key, shape, jnp.float32, -limit, limit)


def build_params(key, h_dim, out_dim, num_rels, num_hidden_layers):
    gain = float(np.sqrt(2.0))  # nn.init.calculate_gain('relu')
    keys = jax.random.split(key, num_hidden_layers + 1)
    params = []
    # layer 0: weight=False -> no per-relation weight, ReLU
    params.append((None, jnp.zeros((h_dim,), jnp.float32), True))
    for i in range(num_hidden_layers):
        params.append((xavier_uniform(keys[i], (num_rels, h_dim, h_dim), gain),
                       jnp.zeros((h_dim,), jnp.float32), True))
    params.append((xavier_uniform(keys[-1], (num_rels, h_dim, out_dim), gain),
                   jnp.zeros((out_dim,), jnp.float32), False))
    return params


def build_graph(key, num_rels, n_nodes):
    # dense random adjacency per relation, right-normalized (divide by dst
    # in-degree, clamped to 1) exactly like GraphConv(norm='right')
    adj = jax.random.bernoulli(key, 0.3, (num_rels, n_nodes, n_nodes))
    adj = adj.astype(jnp.float32)
    deg = jnp.clip(jnp.sum(adj, axis=-1, keepdims=True), 1.0, None)
    return adj / deg


def ref_forward(h, blocks, params, dtype):
    """Pure-JAX reference with the same stream-dtype casting as the kernels."""
    for a, (w, b, relu) in zip(blocks, params):
        num_rels = a.shape[0]
        hd = h.astype(dtype)
        if w is None:
            xw = jnp.broadcast_to(hd, (num_rels,) + hd.shape)
        else:
            xw = jnp.einsum('nf,rfo->rno', hd, w.astype(dtype),
                            preferred_element_type=jnp.float32).astype(dtype)
        h = jnp.einsum('rds,rso->do', a.astype(dtype), xw,
                       preferred_element_type=jnp.float32) + b
        if relu:
            h = jnp.maximum(h, 0.0)
    return h


if __name__ == "__main__":
    h_dim, out_dim = 32, 16
    num_rels = 3
    num_hidden_layers = 1        # -> 3 layers total, as in EntityClassify

    root = jax.random.PRNGKey(0)
    k_feat, k_graph, k_param = jax.random.split(root, 3)
    params = build_params(k_param, h_dim, out_dim, num_rels, num_hidden_layers)

    # --- test 1: single-tile graph, f32 streams (exact check) + bf16 streams
    n_nodes = 64
    feats = jax.random.normal(k_feat, (n_nodes, h_dim), jnp.float32)
    a_norm = build_graph(k_graph, num_rels, n_nodes)
    blocks = [a_norm] * (num_hidden_layers + 2)   # same block graph per layer

    out_f32 = jax.block_until_ready(
        entity_classify_forward(feats, blocks, params,
                                stream_dtype=jnp.float32))
    assert out_f32.shape == (n_nodes, out_dim)
    ref_f32 = ref_forward(feats, blocks, params, jnp.float32)
    np.testing.assert_allclose(np.asarray(out_f32), np.asarray(ref_f32),
                               rtol=1e-4, atol=1e-4)

    out_bf16 = jax.block_until_ready(
        entity_classify_forward(feats, blocks, params,
                                stream_dtype=jnp.bfloat16))
    ref_bf16 = ref_forward(feats, blocks, params, jnp.bfloat16)
    np.testing.assert_allclose(np.asarray(out_bf16), np.asarray(ref_bf16),
                               rtol=2e-2, atol=2e-2)

    # --- test 2: multi-tile grid (2 dst x 2 src tiles) exercising the padded /
    # tiled accumulation path, both resident-XW and streamed-XW fallback.
    n_nodes2 = 200
    feats2 = jax.random.normal(k_feat, (n_nodes2, h_dim), jnp.float32)
    a_norm2 = build_graph(k_graph, num_rels, n_nodes2)
    blocks2 = [a_norm2] * (num_hidden_layers + 2)
    ref2 = ref_forward(feats2, blocks2, params, jnp.float32)

    out2 = jax.block_until_ready(
        entity_classify_forward(feats2, blocks2, params,
                                stream_dtype=jnp.float32,
                                max_block_m=128, max_block_k=128))
    np.testing.assert_allclose(np.asarray(out2), np.asarray(ref2),
                               rtol=1e-4, atol=1e-4)

    out2_tiled = jax.block_until_ready(
        entity_classify_forward(feats2, blocks2, params,
                                stream_dtype=jnp.float32,
                                max_block_m=128, max_block_k=128,
                                force_xw_tiled=True))
    np.testing.assert_allclose(np.asarray(out2_tiled), np.asarray(ref2),
                               rtol=1e-4, atol=1e-4)

    print("KERNEL_OK")
</pallas_src>

<mosaic_0001>
module attributes {stable_mosaic.version = 11 : i64} {
  func.func @_rgcn_agg_kernel(%arg0: i32, %arg1: i32, %arg2: i32, %arg3: memref<1x128x128xf32, #tpu.memory_space<vmem>>, %arg4: memref<128x128xf32, #tpu.memory_space<vmem>>, %arg5: memref<1x128xf32, #tpu.memory_space<vmem>>, %arg6: memref<128x128xf32, #tpu.memory_space<vmem>>, %arg7: memref<128x128xf32, #tpu.memory_space<vmem>>) attributes {dimension_semantics = [#tpu.dimension_semantics<parallel>, #tpu.dimension_semantics<arbitrary>, #tpu.dimension_semantics<arbitrary>], iteration_bounds = array<i64: 1, 3, 1>, scalar_prefetch = 0 : i64, scratch_operands = 1 : i64, tpu.core_type = #tpu.core_type<tc>, window_params = [{transform_indices = @transform_0, window_bounds = array<i64: 1, 128, 128>}, {pipeline_mode = #tpu.pipeline_mode<synchronous>, transform_indices = @transform_1, window_bounds = array<i64: 128, 128>}, {pipeline_mode = #tpu.pipeline_mode<synchronous>, transform_indices = @transform_2, window_bounds = array<i64: 1, 128>}, {transform_indices = @transform_3, window_bounds = array<i64: 128, 128>}]} {
    %c0_i32 = arith.constant 0 : i32
    %0 = arith.cmpi eq, %arg1, %c0_i32 : i32
    %c0_i32_0 = arith.constant 0 : i32
    %1 = arith.cmpi eq, %arg2, %c0_i32_0 : i32
    %2 = arith.andi %0, %1 : i1
    %3 = arith.extui %2 : i1 to i32
    %c0_i32_1 = arith.constant 0 : i32
    %4 = arith.cmpi ne, %3, %c0_i32_1 : i32
    scf.if %4 {
      %cst_12 = arith.constant 0.000000e+00 : f32
      %21 = vector.broadcast %cst_12 : f32 to vector<128x128xf32>
      %c0_13 = arith.constant 0 : index
      %c0_14 = arith.constant 0 : index
      %22 = vector.load %arg7[%c0_13, %c0_14] : memref<128x128xf32, #tpu.memory_space<vmem>>, vector<128x128xf32>
      tpu.vector_store %arg7[%c0_13, %c0_14], %21 {strides = array<i32>} : memref<128x128xf32, #tpu.memory_space<vmem>>, vector<128x128xf32>,
    } else {
    }
    %c128_i32 = arith.constant 128 : i32
    %5 = arith.muli %arg2, %c128_i32 : i32
    %c0_i32_2 = arith.constant 0 : i32
    %6 = arith.addi %5, %c0_i32_2 : i32
    %7 = tpu.assume_multiple %6, 128 : i32
    %8 = arith.index_cast %7 : i32 to index
    %c0 = arith.constant 0 : index
    %9 = vector.load %arg4[%8, %c0] : memref<128x128xf32, #tpu.memory_space<vmem>>, vector<128x128xf32>
    %c0_3 = arith.constant 0 : index
    %c0_4 = arith.constant 0 : index
    %10 = vector.load %arg7[%c0_3, %c0_4] : memref<128x128xf32, #tpu.memory_space<vmem>>, vector<128x128xf32>
    %c0_5 = arith.constant 0 : index
    %c0_6 = arith.constant 0 : index
    %c0_7 = arith.constant 0 : index
    %11 = vector.load %arg3[%c0_5, %c0_6, %c0_7] : memref<1x128x128xf32, #tpu.memory_space<vmem>>, vector<1x128x128xf32>
    %12 = vector.shape_cast %11 : vector<1x128x128xf32> to vector<128x128xf32>
    %cst = arith.constant dense<0.000000e+00> : vector<128x128xf32>
    %13 = tpu.matmul %12, %9, %cst {dimension_numbers = #tpu.dot_dimension_numbers<[1], [0], [0], [1], [0, 0, 1, 1], [], []>} : vector<128x128xf32>, vector<128x128xf32>, vector<128x128xf32> -> vector<128x128xf32>
    %14 = arith.addf %10, %13 : vector<128x128xf32>
    %c0_8 = arith.constant 0 : index
    %c0_9 = arith.constant 0 : index
    %15 = vector.load %arg7[%c0_8, %c0_9] : memref<128x128xf32, #tpu.memory_space<vmem>>, vector<128x128xf32>
    tpu.vector_store %arg7[%c0_8, %c0_9], %14 {strides = array<i32>} : memref<128x128xf32, #tpu.memory_space<vmem>>, vector<128x128xf32>,
    %c2_i32 = arith.constant 2 : i32
    %16 = arith.cmpi eq, %arg1, %c2_i32 : i32
    %c0_i32_10 = arith.constant 0 : i32
    %17 = arith.cmpi eq, %arg2, %c0_i32_10 : i32
    %18 = arith.andi %16, %17 : i1
    %19 = arith.extui %18 : i1 to i32
    %c0_i32_11 = arith.constant 0 : i32
    %20 = arith.cmpi ne, %19, %c0_i32_11 : i32
    scf.if %20 {
      %c0_12 = arith.constant 0 : index
      %c0_13 = arith.constant 0 : index
      %21 = vector.load %arg7[%c0_12, %c0_13] : memref<128x128xf32, #tpu.memory_space<vmem>>, vector<128x128xf32>
      %c0_14 = arith.constant 0 : index
      %c0_15 = arith.constant 0 : index
      %22 = vector.load %arg5[%c0_14, %c0_15] : memref<1x128xf32, #tpu.memory_space<vmem>>, vector<1x128xf32>
      %23 = vector.broadcast %22 : vector<1x128xf32> to vector<128x128xf32>
      %24 = arith.addf %21, %23 : vector<128x128xf32>
      %cst_16 = arith.constant 0.000000e+00 : f32
      %25 = vector.broadcast %cst_16 : f32 to vector<128x128xf32>
      %26 = arith.maximumf %24, %25 : vector<128x128xf32>
      %c0_17 = arith.constant 0 : index
      %c0_18 = arith.constant 0 : index
      %27 = vector.load %arg6[%c0_17, %c0_18] : memref<128x128xf32, #tpu.memory_space<vmem>>, vector<128x128xf32>
      tpu.vector_store %arg6[%c0_17, %c0_18], %26 {strides = array<i32>} : memref<128x128xf32, #tpu.memory_space<vmem>>, vector<128x128xf32>,
    } else {
    }
    return
  }
  func.func @transform_0(%arg0: i32, %arg1: i32, %arg2: i32) -> (i32, i32, i32) {
    %c0_i32 = arith.constant 0 : i32
    return %arg1, %arg0, %arg2 : i32, i32, i32
  }
  func.func @transform_1(%arg0: i32, %arg1: i32, %arg2: i32) -> (i32, i32) {
    %c0_i32 = arith.constant 0 : i32
    %c0_i32_0 = arith.constant 0 : i32
    %c0_i32_1 = arith.constant 0 : i32
    return %c0_i32, %c0_i32_0 : i32, i32
  }
  func.func @transform_2(%arg0: i32, %arg1: i32, %arg2: i32) -> (i32, i32) {
    %c0_i32 = arith.constant 0 : i32
    %c0_i32_0 = arith.constant 0 : i32
    %c0_i32_1 = arith.constant 0 : i32
    return %c0_i32, %c0_i32_0 : i32, i32
  }
  func.func @transform_3(%arg0: i32, %arg1: i32, %arg2: i32) -> (i32, i32) {
    %c0_i32 = arith.constant 0 : i32
    %c0_i32_0 = arith.constant 0 : i32
    return %arg0, %c0_i32 : i32, i32
  }
}

</mosaic_0001>

<llo_original>
// kernel: tpu_custom_call.1
$region0: #{tpu_custom_call.1}
  #allocation0 [shape = 'u32[]', space=smem, size = 0x4, offset = 0x4, fixed_abs, tag = 'smem constant byte address 0x4 - core index']
  #allocation1 [shape = 'u32[144,128]{1,0:T(1,128)}', space=vmem, size = 0x12000, scoped, tag = 'internal scratch']
  #allocation2 [shape = 'f32[128,128]{1,0:T(8,128)}', space=vmem, size = 0x10000, scoped, tag = 'scratch operand']
  %s0 = inlined_call_operand.hbm [shape: f32[3,128,128], index: 0, kind: input, shape index: {}]
  %s1 = inlined_call_operand.hbm [shape: f32[128,128], index: 1, kind: input, shape index: {}]
  %s2 = inlined_call_operand.vmem [shape: f32[1,128], index: 2, kind: input, shape index: {}]
  %s3 = inlined_call_operand.hbm [shape: f32[128,128], index: 3, kind: output, shape index: {}]
  %s4 = sld [smem:[#allocation0]]
  $region61: #{tpu_custom_call.1} parent=0
    _
  %s6 = ssub.s32 1, %s4
  %s7 = scalar_select 0, %s6, %s4
  $region1: #{tpu_custom_call.1} parent=0
    #allocation3 [shape = 'u8[131072]{0}', space=vmem, size = 0x20000, scoped, tag = 'input window, operand 0']
    #allocation4 [shape = 's32[2]{0}', space=sflag, size = 0x8, scoped, tag = 'scoped memory for tpu_custom_call.1']
    #allocation5 [shape = 's32[2]{0}', space=sflag, size = 0x8, scoped, tag = 'scoped memory for tpu_custom_call.1']
    #allocation6 [shape = 'u8[65536]{0}', space=vmem, size = 0x10000, scoped, tag = 'input window, operand 1, single buffered']
    #allocation7 [shape = 's32[1]{0}', space=sflag, size = 0x4, scoped, tag = 'scoped memory for tpu_custom_call.1']
    #allocation8 [shape = 'u8[65536]{0}', space=vmem, size = 0x10000, scoped, tag = 'output window, operand 0, single buffered']
    %8 = vsyncpa [#allocation4], 0
    %s9 = scalar_lea.sflag [#allocation4], 1
    %10 = vsyncpa %s9, 0
    %11 = vsyncpa [#allocation7], 0
    %12 = vsyncpa [#allocation5], 0
    loop: start=0, step=1, limit=5
    $region2: #{tpu_custom_call.1} parent=1 // loop_pre_header
      _
    $region3: #{tpu_custom_call.1} parent=1 // loop_header
      %s14 = sphi 0, %s18
      %p15 = scmp.ge.s32.totalorder %s14, 5
      %s21 = sphi 0, %s40
      %s22 = sphi 0, %s36
      %s23 = sphi 0, %s32
      %s24 = sphi 0, %s21
      %s25 = sphi 0, %s22
      %s26 = sphi 0, %s23
      %s27 = sphi 0, %s24
      %s28 = sphi 0, %s25
      %s29 = sphi 0, %s26
      %s47 = sphi 0, %s49
      %s50 = sphi 0, %s47
      %s51 = sphi 0, %s50
      %s67 = sphi 0, %s51
      %s71 = sphi 0, %s71
      %s73 = sphi 0, %s71
      %s74 = sphi 0, %s73
      %s88 = sphi 0, %s74
      %s92 = sphi 0, %s92
      %s94 = sphi 0, %s92
      %s95 = sphi 0, %s94
      %s109 = sphi 0, %s95
      %s115 = sphi 0, %s117
      %s118 = sphi 0, %s115
      %s119 = sphi 0, %s118
      %s135 = sphi 0, %s119
    $region4: #{tpu_custom_call.1} parent=1 // loop_header_branch
      %17 = sbr.rel (%p15) target = $region8
    $region5: #{tpu_custom_call.1} parent=1 // loop_body
      %s19 = ssub.s32 %s14, 1
      %s20 = ssub.s32 %s14, 2
      %s30 = sadd.s32 1, %s23
      %p31 = scmp.ge.s32.totalorder %s30, 1
      %s32 = scalar_select %p31, 0, %s30
      %s33 = sadd.s32 1, %s22
      %s34 = scalar_select %p31, %s33, %s22
      %p35 = scmp.ge.s32.totalorder %s34, 3
      %s36 = scalar_select %p35, 0, %s34
      %s37 = sadd.s32 1, %s21
      %s38 = scalar_select %p35, %s37, %s21
      %p39 = scmp.ge.s32.totalorder %s38, 1
      %s40 = scalar_select %p39, 0, %s38
      %s41 = ssub.s32 %s22, %s36
      %s42 = ssub.s32 %s21, %s40
      %s43 = sor.u32 %s41, %s42
      %s44 = ssub.s32 %s23, %s32
      %s45 = sor.u32 %s43, %s44
      %p46 = scmp.eq.s32.totalorder %s45, 0
      %s48 = sadd.s32 %s47, 1
      %s49 = scalar_select %p46, %s47, %s48
      %p52 = pneg %p46
      %p53 = scmp.eq.s32.totalorder %s14, 2
      %p54 = por %p52, %p53
      %p55 = scmp.ne.s32.totalorder %s47, %s50
      %p56 = scmp.eq.s32.totalorder %s14, 0
      %p57 = por %p55, %p56
      %p58 = scmp.ne.s32.totalorder %s47, %s50
      %p59 = scmp.eq.s32.totalorder %s19, 2
      %p60 = por %p58, %p59
      %p61 = scmp.ne.s32.totalorder %s50, %s51
      %p62 = scmp.eq.s32.totalorder %s19, 0
      %p63 = por %p61, %p62
      %p64 = scmp.ne.s32.totalorder %s50, %s51
      %p65 = scmp.eq.s32.totalorder %s20, 2
      %p66 = por %p64, %p65
      %p68 = scmp.ne.s32.totalorder %s51, %s67
      %p69 = scmp.eq.s32.totalorder %s20, 0
      %p70 = por %p68, %p69
      %s72 = sadd.s32 %s71, 1
      %p75 = scmp.eq.s32.totalorder %s14, 2
      %p76 = scmp.ne.s32.totalorder %s71, %s73
      %p77 = scmp.eq.s32.totalorder %s14, 0
      %p78 = por %p76, %p77
      %p79 = scmp.ne.s32.totalorder %s71, %s73
      %p80 = scmp.eq.s32.totalorder %s19, 2
      %p81 = por %p79, %p80
      %p82 = scmp.ne.s32.totalorder %s73, %s74
      %p83 = scmp.eq.s32.totalorder %s19, 0
      %p84 = por %p82, %p83
      %p85 = scmp.ne.s32.totalorder %s73, %s74
      %p86 = scmp.eq.s32.totalorder %s20, 2
      %p87 = por %p85, %p86
      %p89 = scmp.ne.s32.totalorder %s74, %s88
      %p90 = scmp.eq.s32.totalorder %s20, 0
      %p91 = por %p89, %p90
      %s93 = sadd.s32 %s92, 1
      %p96 = scmp.eq.s32.totalorder %s14, 2
      %p97 = scmp.ne.s32.totalorder %s92, %s94
      %p98 = scmp.eq.s32.totalorder %s14, 0
      %p99 = por %p97, %p98
      %p100 = scmp.ne.s32.totalorder %s92, %s94
      %p101 = scmp.eq.s32.totalorder %s19, 2
      %p102 = por %p100, %p101
      %p103 = scmp.ne.s32.totalorder %s94, %s95
      %p104 = scmp.eq.s32.totalorder %s19, 0
      %p105 = por %p103, %p104
      %p106 = scmp.ne.s32.totalorder %s94, %s95
      %p107 = scmp.eq.s32.totalorder %s20, 2
      %p108 = por %p106, %p107
      %p110 = scmp.ne.s32.totalorder %s95, %s109
      %p111 = scmp.eq.s32.totalorder %s20, 0
      %p112 = por %p110, %p111
      %s113 = ssub.s32 %s21, %s40
      %p114 = scmp.eq.s32.totalorder %s113, 0
      %s116 = sadd.s32 %s115, 1
      %s117 = scalar_select %p114, %s115, %s116
      %p120 = pneg %p114
      %p121 = scmp.eq.s32.totalorder %s14, 2
      %p122 = por %p120, %p121
      %p123 = scmp.ne.s32.totalorder %s115, %s118
      %p124 = scmp.eq.s32.totalorder %s14, 0
      %p125 = por %p123, %p124
      %p126 = scmp.ne.s32.totalorder %s115, %s118
      %p127 = scmp.eq.s32.totalorder %s19, 2
      %p128 = por %p126, %p127
      %p129 = scmp.ne.s32.totalorder %s118, %s119
      %p130 = scmp.eq.s32.totalorder %s19, 0
      %p131 = por %p129, %p130
      %p132 = scmp.ne.s32.totalorder %s118, %s119
      %p133 = scmp.eq.s32.totalorder %s20, 2
      %p134 = por %p132, %p133
      %p136 = scmp.ne.s32.totalorder %s119, %s135
      %p137 = scmp.eq.s32.totalorder %s20, 0
      %p138 = por %p136, %p137
      %p139 = scmp.le.s32.totalorder 1, %s14
      %p140 = scmp.lt.s32.totalorder %s14, 4
      %p141 = pnand %p139, %p140
      %p142 = pneg %p141
      // Predicated region
      $region9: #{tpu_custom_call.1} parent=5 // pred_check
        _
      $region10: #{tpu_custom_call.1} parent=5 // pred_check_branch
        %144 = sbr.rel (%p141) target = $region12
      $region11: #{tpu_custom_call.1} parent=5 // pred_region
        %s145 = ssub.s32 %s14, 1
        // Predicated region
        $region13: #{tpu_custom_call.1} parent=11 // pred_check
          %p146 = pneg %p84
        $region14: #{tpu_custom_call.1} parent=11 // pred_check_branch
          %148 = sbr.rel (%p146) target = $region16
        $region15: #{tpu_custom_call.1} parent=11 // pred_region
          %s150 = ssub.s32 2048, 2048
          %151 = vsyncadd [#allocation7], %s150
          %s152 = sshll.u32 [#allocation6], 4
          %s153 = int_to_ptr.vmem [resolvable:$true] %s152
          %158 = dma.hbm_to_vmem [thread:$0]  %s1, 2048, %s153, [#allocation7], 128, 128, 8
        $region16: #{tpu_custom_call.1} parent=11 // pred_fallthru
          _
        // Predicated region
        $region17: #{tpu_custom_call.1} parent=11 // pred_check
          %p159 = pneg %p105
        $region18: #{tpu_custom_call.1} parent=11 // pred_check_branch
          %161 = sbr.rel (%p159) target = $region20
        $region19: #{tpu_custom_call.1} parent=11 // pred_region
          _
        $region20: #{tpu_custom_call.1} parent=11 // pred_fallthru
          _
      $region12: #{tpu_custom_call.1} parent=5 // pred_fallthru
        _
      %p162 = scmp.lt.s32.totalorder %s14, 3
      // Predicated region
      $region21: #{tpu_custom_call.1} parent=5 // pred_check
        %p163 = pneg %p162
      $region22: #{tpu_custom_call.1} parent=5 // pred_check_branch
        %165 = sbr.rel (%p163) target = $region24
      $region23: #{tpu_custom_call.1} parent=5 // pred_region
        // Predicated region
        $region25: #{tpu_custom_call.1} parent=23 // pred_check
          %p166 = pneg %p57
        $region26: #{tpu_custom_call.1} parent=23 // pred_check_branch
          %168 = sbr.rel (%p166) target = $region28
        $region27: #{tpu_custom_call.1} parent=23 // pred_region
          %s169 = sand.u32 %s47, 1
          %s170 = scalar_lea.sflag [#allocation4], %s169
          %s171 = sand.u32 %s47, 1
          %s172 = smul.addr %s171, 128
          %s173 = scalar_lea.vmem [#allocation3], %s172
          %s174 = smul.u32 16, %s21
          %s176 = ssub.s32 2048, 2048
          %177 = vsyncadd %s170, %s176
          %s178 = sadd.s32 %s23, %s174
          %s179 = smul.addr %s22, 16
          %s180 = sadd.s32 %s178, %s179
          %s181 = smul.addr %s180, 128
          %s182 = scalar_lea.hbm %s0, %s181
          %s183 = sshll.u32 %s173, 4
          %s184 = int_to_ptr.vmem [resolvable:$true] %s183
          %189 = dma.hbm_to_vmem [thread:$0]  %s182, 2048, %s184, %s170, 128, 128, 8
        $region28: #{tpu_custom_call.1} parent=23 // pred_fallthru
          _
      $region24: #{tpu_custom_call.1} parent=5 // pred_fallthru
        _
      %p190 = scmp.le.s32.totalorder 1, %s14
      %p191 = scmp.lt.s32.totalorder %s14, 4
      %p192 = pnand %p190, %p191
      %p193 = pneg %p192
      // Predicated region
      $region29: #{tpu_custom_call.1} parent=5 // pred_check
        _
      $region30: #{tpu_custom_call.1} parent=5 // pred_check_branch
        %195 = sbr.rel (%p192) target = $region32
      $region31: #{tpu_custom_call.1} parent=5 // pred_region
        %s196 = ssub.s32 %s14, 1
        %s197 = sand.u32 %s50, 1
        %s198 = scalar_lea.sflag [#allocation4], %s197
        %s199 = sand.u32 %s50, 1
        %s200 = smul.addr %s199, 128
        %s201 = scalar_lea.vmem [#allocation3], %s200
        // Predicated region
        $region33: #{tpu_custom_call.1} parent=31 // pred_check
          %p202 = pneg %p63
        $region34: #{tpu_custom_call.1} parent=31 // pred_check_branch
          %204 = sbr.rel (%p202) target = $region36
        $region35: #{tpu_custom_call.1} parent=31 // pred_region
          %205 = dma.done %s198, 2048
        $region36: #{tpu_custom_call.1} parent=31 // pred_fallthru
          _
        // Predicated region
        $region37: #{tpu_custom_call.1} parent=31 // pred_check
          %p206 = pneg %p84
        $region38: #{tpu_custom_call.1} parent=31 // pred_check_branch
          %208 = sbr.rel (%p206) target = $region40
        $region39: #{tpu_custom_call.1} parent=31 // pred_region
          %209 = dma.done [#allocation7], 2048
        $region40: #{tpu_custom_call.1} parent=31 // pred_fallthru
          _
        %s210 = sand.u32 %s50, 1
        %s211 = scalar_lea.sflag [#allocation4], %s210
        %s212 = sand.u32 %s50, 1
        %s213 = smul.addr %s212, 128
        %s214 = scalar_lea.vmem [#allocation3], %s213
        %p215 = pneg %p63
        %p216 = pneg %p60
        %p217 = pneg %p84
        %p218 = pneg %p81
        %p219 = pneg %p105
        %p220 = pneg %p102
        %p221 = pneg %p131
        %p222 = pneg %p128
        %s223 = smul.u32 16, %s24
        %s224 = smul.u32 16, %s24
        %p225 = scmp.eq.s32.totalorder %s25, 0
        %p226 = scmp.eq.s32.totalorder %s26, 0
        %p227 = pnand %p225, %p226
        %p228 = pneg %p227
        // Predicated region
        $region41: #{tpu_custom_call.1} parent=31 // pred_check
          _
        $region42: #{tpu_custom_call.1} parent=31 // pred_check_branch
          %230 = sbr.rel (%p227) target = $region44
        $region43: #{tpu_custom_call.1} parent=31 // pred_region
          %231 = vst [vmem:[#allocation2] sm:$0xff] 0.0
          %232 = vst [vmem:[#allocation2 + $0x8] sm:$0xff] 0.0
          %233 = vst [vmem:[#allocation2 + $0x10] sm:$0xff] 0.0
          %234 = vst [vmem:[#allocation2 + $0x18] sm:$0xff] 0.0
          %235 = vst [vmem:[#allocation2 + $0x20] sm:$0xff] 0.0
          %236 = vst [vmem:[#allocation2 + $0x28] sm:$0xff] 0.0
          %237 = vst [vmem:[#allocation2 + $0x30] sm:$0xff] 0.0
          %238 = vst [vmem:[#allocation2 + $0x38] sm:$0xff] 0.0
          %239 = vst [vmem:[#allocation2 + $0x40] sm:$0xff] 0.0
          %240 = vst [vmem:[#allocation2 + $0x48] sm:$0xff] 0.0
          %241 = vst [vmem:[#allocation2 + $0x50] sm:$0xff] 0.0
          %242 = vst [vmem:[#allocation2 + $0x58] sm:$0xff] 0.0
          %243 = vst [vmem:[#allocation2 + $0x60] sm:$0xff] 0.0
          %244 = vst [vmem:[#allocation2 + $0x68] sm:$0xff] 0.0
          %245 = vst [vmem:[#allocation2 + $0x70] sm:$0xff] 0.0
          %246 = vst [vmem:[#allocation2 + $0x78] sm:$0xff] 0.0
        $region44: #{tpu_custom_call.1} parent=31 // pred_fallthru
          _
        %s247 = smul.u32 %s26, 128
        %s248 = scalar_lea.vmem [#allocation6], %s247
        %v249 = vld [vmem:[%s248] sm:$0xff]
        %v250 = vld [vmem:[%s248 + $0x8] sm:$0xff]
        %v251 = vld [vmem:[%s248 + $0x10] sm:$0xff]
        %v252 = vld [vmem:[%s248 + $0x18] sm:$0xff]
        %v253 = vld [vmem:[%s248 + $0x20] sm:$0xff]
        %v254 = vld [vmem:[%s248 + $0x28] sm:$0xff]
        %v255 = vld [vmem:[%s248 + $0x30] sm:$0xff]
        %v256 = vld [vmem:[%s248 + $0x38] sm:$0xff]
        %v257 = vld [vmem:[%s248 + $0x40] sm:$0xff]
        %v258 = vld [vmem:[%s248 + $0x48] sm:$0xff]
        %v259 = vld [vmem:[%s248 + $0x50] sm:$0xff]
        %v260 = vld [vmem:[%s248 + $0x58] sm:$0xff]
        %v261 = vld [vmem:[%s248 + $0x60] sm:$0xff]
        %v262 = vld [vmem:[%s248 + $0x68] sm:$0xff]
        %v263 = vld [vmem:[%s248 + $0x70] sm:$0xff]
        %v264 = vld [vmem:[%s248 + $0x78] sm:$0xff]
        %v265 = vld [vmem:[#allocation2] sm:$0xff]
        %v266 = vld [vmem:[#allocation2 + $0x8] sm:$0xff]
        %v267 = vld [vmem:[#allocation2 + $0x10] sm:$0xff]
        %v268 = vld [vmem:[#allocation2 + $0x18] sm:$0xff]
        %v269 = vld [vmem:[#allocation2 + $0x20] sm:$0xff]
        %v270 = vld [vmem:[#allocation2 + $0x28] sm:$0xff]
        %v271 = vld [vmem:[#allocation2 + $0x30] sm:$0xff]
        %v272 = vld [vmem:[#allocation2 + $0x38] sm:$0xff]
        %v273 = vld [vmem:[#allocation2 + $0x40] sm:$0xff]
        %v274 = vld [vmem:[#allocation2 + $0x48] sm:$0xff]
        %v275 = vld [vmem:[#allocation2 + $0x50] sm:$0xff]
        %v276 = vld [vmem:[#allocation2 + $0x58] sm:$0xff]
        %v277 = vld [vmem:[#allocation2 + $0x60] sm:$0xff]
        %v278 = vld [vmem:[#allocation2 + $0x68] sm:$0xff]
        %v279 = vld [vmem:[#allocation2 + $0x70] sm:$0xff]
        %v280 = vld [vmem:[#allocation2 + $0x78] sm:$0xff]
        %v281 = vld [vmem:[%s201] sm:$0xff]
        %v282 = vld [vmem:[%s201 + $0x8] sm:$0xff]
        %v283 = vld [vmem:[%s201 + $0x10] sm:$0xff]
        %v284 = vld [vmem:[%s201 + $0x18] sm:$0xff]
        %v285 = vld [vmem:[%s201 + $0x20] sm:$0xff]
        %v286 = vld [vmem:[%s201 + $0x28] sm:$0xff]
        %v287 = vld [vmem:[%s201 + $0x30] sm:$0xff]
        %v288 = vld [vmem:[%s201 + $0x38] sm:$0xff]
        %v289 = vld [vmem:[%s201 + $0x40] sm:$0xff]
        %v290 = vld [vmem:[%s201 + $0x48] sm:$0xff]
        %v291 = vld [vmem:[%s201 + $0x50] sm:$0xff]
        %v292 = vld [vmem:[%s201 + $0x58] sm:$0xff]
        %v293 = vld [vmem:[%s201 + $0x60] sm:$0xff]
        %v294 = vld [vmem:[%s201 + $0x68] sm:$0xff]
        %v295 = vld [vmem:[%s201 + $0x70] sm:$0xff]
        %v296 = vld [vmem:[%s201 + $0x78] sm:$0xff]
        %297 = vmatprep.subr.mxu0 0.0
        %298 = vmatpush1.msra.mxu0 %v264
        %299 = vmatprep.subr.mxu0 0.0
        %300 = vmatpush1.msra.mxu0 %v263
        %301 = vmatprep.subr.mxu0 0.0
        %302 = vmatpush1.msra.mxu0 %v262
        %303 = vmatprep.subr.mxu0 0.0
        %304 = vmatpush1.msra.mxu0 %v261
        %305 = vmatprep.subr.mxu0 0.0
        %306 = vmatpush1.msra.mxu0 %v260
        %307 = vmatprep.subr.mxu0 0.0
        %308 = vmatpush1.msra.mxu0 %v259
        %309 = vmatprep.subr.mxu0 0.0
        %310 = vmatpush1.msra.mxu0 %v258
        %311 = vmatprep.subr.mxu0 0.0
        %312 = vmatpush1.msra.mxu0 %v257
        %313 = vmatprep.subr.mxu0 0.0
        %314 = vmatpush1.msra.mxu0 %v256
        %315 = vmatprep.subr.mxu0 0.0
        %316 = vmatpush1.msra.mxu0 %v255
        %317 = vmatprep.subr.mxu0 0.0
        %318 = vmatpush1.msra.mxu0 %v254
        %319 = vmatprep.subr.mxu0 0.0
        %320 = vmatpush1.msra.mxu0 %v253
        %321 = vmatprep.subr.mxu0 0.0
        %322 = vmatpush1.msra.mxu0 %v252
        %323 = vmatprep.subr.mxu0 0.0
        %324 = vmatpush1.msra.mxu0 %v251
        %325 = vmatprep.subr.mxu0 0.0
        %326 = vmatpush1.msra.mxu0 %v250
        %327 = vmatprep.subr.mxu0 0.0
        %328 = vmatpush1.msra.mxu0 %v249
        %329 = vmatprep.subr.mxu0 0.0
        %330 = vmatpush2.msra.mxu0 0.0
        %331 = vmatprep.subr.mxu0 0.0
        %332 = vmatpush2.msra.mxu0 0.0
        %333 = vmatprep.subr.mxu0 0.0
        %334 = vmatpush2.msra.mxu0 0.0
        %335 = vmatprep.subr.mxu0 0.0
        %336 = vmatpush2.msra.mxu0 0.0
        %337 = vmatprep.subr.mxu0 0.0
        %338 = vmatpush2.msra.mxu0 0.0
        %339 = vmatprep.subr.mxu0 0.0
        %340 = vmatpush2.msra.mxu0 0.0
        %341 = vmatprep.subr.mxu0 0.0
        %342 = vmatpush2.msra.mxu0 0.0
        %343 = vmatprep.subr.mxu0 0.0
        %344 = vmatpush2.msra.mxu0 0.0
        %345 = vmatprep.subr.mxu0 0.0
        %346 = vmatpush2.msra.mxu0 0.0
        %347 = vmatprep.subr.mxu0 0.0
        %348 = vmatpush2.msra.mxu0 0.0
        %349 = vmatprep.subr.mxu0 0.0
        %350 = vmatpush2.msra.mxu0 0.0
        %351 = vmatprep.subr.mxu0 0.0
        %352 = vmatpush2.msra.mxu0 0.0
        %353 = vmatprep.subr.mxu0 0.0
        %354 = vmatpush2.msra.mxu0 0.0
        %355 = vmatprep.subr.mxu0 0.0
        %356 = vmatpush2.msra.mxu0 0.0
        %357 = vmatprep.subr.mxu0 0.0
        %358 = vmatpush2.msra.mxu0 0.0
        %359 = vmatprep.subr.mxu0 0.0
        %360 = vmatpush2.msra.mxu0 0.0
        %361 = vmatprep.mubr.f32.mxu0 0.0
        %362 = vmatmul.mubr.f32.gmra.mxu0 %v281
        %v363 = vpop.f32.mrf.mxu0
        %v364 = vadd.f32 0.0, %v363
        %v365 = vpop.f32.mrf.mxu0
        %366 = vmatprep.mubr.f32.mxu0 0.0
        %367 = vmatmul.mubr.f32.gmra.mxu0 %v282
        %v368 = vpop.f32.mrf.mxu0
        %v369 = vadd.f32 0.0, %v368
        %v370 = vpop.f32.mrf.mxu0
        %371 = vmatprep.mubr.f32.mxu0 0.0
        %372 = vmatmul.mubr.f32.gmra.mxu0 %v283
        %v373 = vpop.f32.mrf.mxu0
        %v374 = vadd.f32 0.0, %v373
        %v375 = vpop.f32.mrf.mxu0
        %376 = vmatprep.mubr.f32.mxu0 0.0
        %377 = vmatmul.mubr.f32.gmra.mxu0 %v284
        %v378 = vpop.f32.mrf.mxu0
        %v379 = vadd.f32 0.0, %v378
        %v380 = vpop.f32.mrf.mxu0
        %381 = vmatprep.mubr.f32.mxu0 0.0
        %382 = vmatmul.mubr.f32.gmra.mxu0 %v285
        %v383 = vpop.f32.mrf.mxu0
        %v384 = vadd.f32 0.0, %v383
        %v385 = vpop.f32.mrf.mxu0
        %386 = vmatprep.mubr.f32.mxu0 0.0
        %387 = vmatmul.mubr.f32.gmra.mxu0 %v286
        %v388 = vpop.f32.mrf.mxu0
        %v389 = vadd.f32 0.0, %v388
        %v390 = vpop.f32.mrf.mxu0
        %391 = vmatprep.mubr.f32.mxu0 0.0
        %392 = vmatmul.mubr.f32.gmra.mxu0 %v287
        %v393 = vpop.f32.mrf.mxu0
        %v394 = vadd.f32 0.0, %v393
        %v395 = vpop.f32.mrf.mxu0
        %396 = vmatprep.mubr.f32.mxu0 0.0
        %397 = vmatmul.mubr.f32.gmra.mxu0 %v288
        %v398 = vpop.f32.mrf.mxu0
        %v399 = vadd.f32 0.0, %v398
        %v400 = vpop.f32.mrf.mxu0
        %401 = vmatprep.mubr.f32.mxu0 0.0
        %402 = vmatmul.mubr.f32.gmra.mxu0 %v289
        %v403 = vpop.f32.mrf.mxu0
        %v404 = vadd.f32 0.0, %v403
        %v405 = vpop.f32.mrf.mxu0
        %406 = vmatprep.mubr.f32.mxu0 0.0
        %407 = vmatmul.mubr.f32.gmra.mxu0 %v290
        %v408 = vpop.f32.mrf.mxu0
        %v409 = vadd.f32 0.0, %v408
        %v410 = vpop.f32.mrf.mxu0
        %411 = vmatprep.mubr.f32.mxu0 0.0
        %412 = vmatmul.mubr.f32.gmra.mxu0 %v291
        %v413 = vpop.f32.mrf.mxu0
        %v414 = vadd.f32 0.0, %v413
        %v415 = vpop.f32.mrf.mxu0
        %416 = vmatprep.mubr.f32.mxu0 0.0
        %417 = vmatmul.mubr.f32.gmra.mxu0 %v292
        %v418 = vpop.f32.mrf.mxu0
        %v419 = vadd.f32 0.0, %v418
        %v420 = vpop.f32.mrf.mxu0
        %421 = vmatprep.mubr.f32.mxu0 0.0
        %422 = vmatmul.mubr.f32.gmra.mxu0 %v293
        %v423 = vpop.f32.mrf.mxu0
        %v424 = vadd.f32 0.0, %v423
        %v425 = vpop.f32.mrf.mxu0
        %426 = vmatprep.mubr.f32.mxu0 0.0
        %427 = vmatmul.mubr.f32.gmra.mxu0 %v294
        %v428 = vpop.f32.mrf.mxu0
        %v429 = vadd.f32 0.0, %v428
        %v430 = vpop.f32.mrf.mxu0
        %431 = vmatprep.mubr.f32.mxu0 0.0
        %432 = vmatmul.mubr.f32.gmra.mxu0 %v295
        %v433 = vpop.f32.mrf.mxu0
        %v434 = vadd.f32 0.0, %v433
        %v435 = vpop.f32.mrf.mxu0
        %436 = vmatprep.mubr.f32.mxu0 0.0
        %437 = vmatmul.mubr.f32.gmra.mxu0 %v296
        %v438 = vpop.f32.mrf.mxu0
        %v439 = vadd.f32 0.0, %v438
        %v440 = vpop.f32.mrf.mxu0
        %441 = vdwg.mxu0
        %v442 = vadd.f32 %v265, %v364
        %v443 = vadd.f32 %v266, %v369
        %v444 = vadd.f32 %v267, %v374
        %v445 = vadd.f32 %v268, %v379
        %v446 = vadd.f32 %v269, %v384
        %v447 = vadd.f32 %v270, %v389
        %v448 = vadd.f32 %v271, %v394
        %v449 = vadd.f32 %v272, %v399
        %v450 = vadd.f32 %v273, %v404
        %v451 = vadd.f32 %v274, %v409
        %v452 = vadd.f32 %v275, %v414
        %v453 = vadd.f32 %v276, %v419
        %v454 = vadd.f32 %v277, %v424
        %v455 = vadd.f32 %v278, %v429
        %v456 = vadd.f32 %v279, %v434
        %v457 = vadd.f32 %v280, %v439
        %458 = vst [vmem:[#allocation2] sm:$0xff] %v442
        %459 = vst [vmem:[#allocation2 + $0x8] sm:$0xff] %v443
        %460 = vst [vmem:[#allocation2 + $0x10] sm:$0xff] %v444
        %461 = vst [vmem:[#allocation2 + $0x18] sm:$0xff] %v445
        %462 = vst [vmem:[#allocation2 + $0x20] sm:$0xff] %v446
        %463 = vst [vmem:[#allocation2 + $0x28] sm:$0xff] %v447
        %464 = vst [vmem:[#allocation2 + $0x30] sm:$0xff] %v448
        %465 = vst [vmem:[#allocation2 + $0x38] sm:$0xff] %v449
        %466 = vst [vmem:[#allocation2 + $0x40] sm:$0xff] %v450
        %467 = vst [vmem:[#allocation2 + $0x48] sm:$0xff] %v451
        %468 = vst [vmem:[#allocation2 + $0x50] sm:$0xff] %v452
        %469 = vst [vmem:[#allocation2 + $0x58] sm:$0xff] %v453
        %470 = vst [vmem:[#allocation2 + $0x60] sm:$0xff] %v454
        %471 = vst [vmem:[#allocation2 + $0x68] sm:$0xff] %v455
        %472 = vst [vmem:[#allocation2 + $0x70] sm:$0xff] %v456
        %473 = vst [vmem:[#allocation2 + $0x78] sm:$0xff] %v457
        %p474 = scmp.eq.s32.totalorder %s25, 2
        %p475 = pnand %p474, %p226
        %p476 = pneg %p475
        // Predicated region
        $region45: #{tpu_custom_call.1} parent=31 // pred_check
          _
        $region46: #{tpu_custom_call.1} parent=31 // pred_check_branch
          %478 = sbr.rel (%p475) target = $region48
        $region47: #{tpu_custom_call.1} parent=31 // pred_region
          %v479 = vld [vmem:[#allocation2] sm:$0xff]
          %v480 = vld [vmem:[#allocation2 + $0x8] sm:$0xff]
          %v481 = vld [vmem:[#allocation2 + $0x10] sm:$0xff]
          %v482 = vld [vmem:[#allocation2 + $0x18] sm:$0xff]
          %v483 = vld [vmem:[#allocation2 + $0x20] sm:$0xff]
          %v484 = vld [vmem:[#allocation2 + $0x28] sm:$0xff]
          %v485 = vld [vmem:[#allocation2 + $0x30] sm:$0xff]
          %v486 = vld [vmem:[#allocation2 + $0x38] sm:$0xff]
          %v487 = vld [vmem:[#allocation2 + $0x40] sm:$0xff]
          %v488 = vld [vmem:[#allocation2 + $0x48] sm:$0xff]
          %v489 = vld [vmem:[#allocation2 + $0x50] sm:$0xff]
          %v490 = vld [vmem:[#allocation2 + $0x58] sm:$0xff]
          %v491 = vld [vmem:[#allocation2 + $0x60] sm:$0xff]
          %v492 = vld [vmem:[#allocation2 + $0x68] sm:$0xff]
          %v493 = vld [vmem:[#allocation2 + $0x70] sm:$0xff]
          %v494 = vld [vmem:[#allocation2 + $0x78] sm:$0xff]
          %v495 = vld [vmem:[%s2] sm:$0x1]
          %v497 = vlaneseq
          %v498 = vshrl.u32 %v497, 7
          %v499 = vsub.s32 0, %v498
          %v500 = vrot.slane %v495, %v499
          %v502 = vadd.f32 %v479, %v500
          %v503 = vadd.f32 %v480, %v500
          %v504 = vadd.f32 %v481, %v500
          %v505 = vadd.f32 %v482, %v500
          %v506 = vadd.f32 %v483, %v500
          %v507 = vadd.f32 %v484, %v500
          %v508 = vadd.f32 %v485, %v500
          %v509 = vadd.f32 %v486, %v500
          %v510 = vadd.f32 %v487, %v500
          %v511 = vadd.f32 %v488, %v500
          %v512 = vadd.f32 %v489, %v500
          %v513 = vadd.f32 %v490, %v500
          %v514 = vadd.f32 %v491, %v500
          %v515 = vadd.f32 %v492, %v500
          %v516 = vadd.f32 %v493, %v500
          %v517 = vadd.f32 %v494, %v500
          %v518 = vmax.f32 %v502, 0.0
          %v519 = vmax.f32 %v503, 0.0
          %v520 = vmax.f32 %v504, 0.0
          %v521 = vmax.f32 %v505, 0.0
          %v522 = vmax.f32 %v506, 0.0
          %v523 = vmax.f32 %v507, 0.0
          %v524 = vmax.f32 %v508, 0.0
          %v525 = vmax.f32 %v509, 0.0
          %v526 = vmax.f32 %v510, 0.0
          %v527 = vmax.f32 %v511, 0.0
          %v528 = vmax.f32 %v512, 0.0
          %v529 = vmax.f32 %v513, 0.0
          %v530 = vmax.f32 %v514, 0.0
          %v531 = vmax.f32 %v515, 0.0
          %v532 = vmax.f32 %v516, 0.0
          %v533 = vmax.f32 %v517, 0.0
          %534 = vst [vmem:[#allocation8] sm:$0xff] %v518
          %535 = vst [vmem:[#allocation8 + $0x8] sm:$0xff] %v519
          %536 = vst [vmem:[#allocation8 + $0x10] sm:$0xff] %v520
          %537 = vst [vmem:[#allocation8 + $0x18] sm:$0xff] %v521
          %538 = vst [vmem:[#allocation8 + $0x20] sm:$0xff] %v522
          %539 = vst [vmem:[#allocation8 + $0x28] sm:$0xff] %v523
          %540 = vst [vmem:[#allocation8 + $0x30] sm:$0xff] %v524
          %541 = vst [vmem:[#allocation8 + $0x38] sm:$0xff] %v525
          %542 = vst [vmem:[#allocation8 + $0x40] sm:$0xff] %v526
          %543 = vst [vmem:[#allocation8 + $0x48] sm:$0xff] %v527
          %544 = vst [vmem:[#allocation8 + $0x50] sm:$0xff] %v528
          %545 = vst [vmem:[#allocation8 + $0x58] sm:$0xff] %v529
          %546 = vst [vmem:[#allocation8 + $0x60] sm:$0xff] %v530
          %547 = vst [vmem:[#allocation8 + $0x68] sm:$0xff] %v531
          %548 = vst [vmem:[#allocation8 + $0x70] sm:$0xff] %v532
          %549 = vst [vmem:[#allocation8 + $0x78] sm:$0xff] %v533
        $region48: #{tpu_custom_call.1} parent=31 // pred_fallthru
          _
        // Predicated region
        $region49: #{tpu_custom_call.1} parent=31 // pred_check
          %p550 = pneg %p128
        $region50: #{tpu_custom_call.1} parent=31 // pred_check_branch
          %552 = sbr.rel (%p550) target = $region52
        $region51: #{tpu_custom_call.1} parent=31 // pred_region
          %s553 = smul.u32 16, %s24
          %s555 = ssub.s32 2048, 2048
          %556 = vsyncadd [#allocation5], %s555
          %s557 = smul.addr %s553, 128
          %s558 = scalar_lea.hbm %s3, %s557
          %s559 = sshll.u32 [#allocation8], 4
          %s560 = int_to_ptr.vmem [resolvable:$true] %s559
          %565 = dma.vmem_to_hbm [thread:$0]  %s560, 2048, %s558, [#allocation5], 128, 128, 8
        $region52: #{tpu_custom_call.1} parent=31 // pred_fallthru
          _
        // Predicated region
        $region53: #{tpu_custom_call.1} parent=31 // pred_check
          %p566 = pneg %p128
        $region54: #{tpu_custom_call.1} parent=31 // pred_check_branch
          %568 = sbr.rel (%p566) target = $region56
        $region55: #{tpu_custom_call.1} parent=31 // pred_region
          %569 = dma.done [#allocation5], 2048
        $region56: #{tpu_custom_call.1} parent=31 // pred_fallthru
          _
      $region32: #{tpu_custom_call.1} parent=5 // pred_fallthru
        _
      %p570 = scmp.le.s32.totalorder 2, %s14
      // Predicated region
      $region57: #{tpu_custom_call.1} parent=5 // pred_check
        %p571 = pneg %p570
      $region58: #{tpu_custom_call.1} parent=5 // pred_check_branch
        %573 = sbr.rel (%p571) target = $region60
      $region59: #{tpu_custom_call.1} parent=5 // pred_region
        %s574 = ssub.s32 %s14, 2
      $region60: #{tpu_custom_call.1} parent=5 // pred_fallthru
        _
    $region6: #{tpu_custom_call.1} parent=1 // loop_footer
      %s18 = sadd.s32 1, %s14
    $region7: #{tpu_custom_call.1} parent=1 // loop_footer_branch
      %13 = sbr.rel target = $region3
    $region8: #{tpu_custom_call.1} parent=1 // loop_exit
      _
    %575 = vsyncpa [#allocation4], 1
    %s576 = scalar_lea.sflag [#allocation4], 1
    %577 = vsyncpa %s576, 1
    %578 = vsyncpa [#allocation7], 1
    %579 = vsyncpa [#allocation5], 1
    %s580 = scalar_lea.sflag [#allocation5], 1
    %581 = vsyncpa %s580, 1

</llo_original>
